<compile_context>
chip_gen: v7x
topology: tpu7x:2x2x1
jax: 0.10.0
libtpu: 0.0.40
codegen_flags: <defaults>
</compile_context>

<pallas_src>
import math

import jax
import jax.numpy as jnp
import numpy as np
from jax import lax
from jax.experimental import pallas as pl
from jax.experimental.pallas import tpu as pltpu


def _make_kernel(C, N, H, W, TH, CH, with_count):
    """Kernel for one (batch, foreground-class, row-tile) grid point.

    Refs (scalar-prefetch first):
      y0/x0/y1/x1_ref : SMEM int32 (B*C*N,)  box rectangles, [y0,y1) x [x0,x1)
      logits_ref      : VMEM (TH, W)  native-layout logits row-tile
      err_ref         : VMEM f32 (1, W)  lane-partial sums of outside logits
      cnt_ref         : VMEM f32 (1, W)  (only when reduction == 'mean')
    """
    num_chunks = TH // CH

    def kernel(y0_ref, x0_ref, y1_ref, x1_ref, logits_ref, *out_refs):
        err_ref = out_refs[0]
        cnt_ref = out_refs[1] if with_count else None

        b = pl.program_id(0)
        c = pl.program_id(1)            # foreground class index -> class c + 1
        t = pl.program_id(2)            # spatial row-tile (reduction axis)

        @pl.when(t == 0)
        def _init():
            err_ref[...] = jnp.zeros_like(err_ref)
            if with_count:
                cnt_ref[...] = jnp.zeros_like(cnt_ref)

        base = (b * C + (c + 1)) * N

        # Hoist per-box scalars and per-box lane (column) masks out of the
        # chunk loop: cheap SMEM reads + N small (1, W) compares per step.
        col_ids = lax.broadcasted_iota(jnp.int32, (1, W), 1)
        y0s, y1s, col_in = [], [], []
        for n in range(N):
            k = base + n
            y0s.append(y0_ref[k])
            y1s.append(y1_ref[k])
            col_in.append((col_ids >= x0_ref[k]) & (col_ids < x1_ref[k]))

        def chunk(ci, carry):
            start = ci * CH
            if not isinstance(start, int):
                start = pl.multiple_of(start, CH)
            row_ids = (t * TH + ci * CH
                       + lax.broadcasted_iota(jnp.int32, (CH, 1), 0))
            inside = jnp.zeros((CH, W), jnp.bool_)
            for n in range(N):
                row_in = (row_ids >= y0s[n]) & (row_ids < y1s[n])     # (CH, 1)
                inside = inside | (row_in & col_in[n])                # (CH, W)
            # Rows beyond H (partial last tile) carry undefined data: exclude
            # them via select (never multiply by garbage).
            keep = (row_ids < H) & jnp.logical_not(inside)            # (CH, W)
            x = logits_ref[pl.ds(start, CH), :].astype(jnp.float32)
            err = carry[0] + jnp.sum(jnp.where(keep, x, 0.0),
                                     axis=0, keepdims=True)
            if with_count:
                cnt = carry[1] + jnp.sum(jnp.where(keep, 1.0, 0.0),
                                         axis=0, keepdims=True)
                return (err, cnt)
            return (err,)

        init = (jnp.zeros((1, W), jnp.float32),)
        if with_count:
            init += (jnp.zeros((1, W), jnp.float32),)

        if num_chunks == 1:
            res = chunk(0, init)
        else:
            res = lax.fori_loop(0, num_chunks, chunk, init,
                                unroll=(num_chunks <= 16))

        # One full-width accumulate into the resident output block per step.
        err_ref[...] = err_ref[...] + res[0]
        if with_count:
            cnt_ref[...] = cnt_ref[...] + res[1]

    return kernel


def outside_box_emptiness_loss(logits, box_coords, annotation_mask=None,
                               reduction="original"):
    """Forward pass of OutsideBoxEmptinessConstraintLoss.

    logits:          (B, C, H, W) softmax probabilities (any float dtype).
    box_coords:      (B, C, N, 4) int  per-box rectangles [y0, x0, y1, x1)
                     (zero-area boxes act as padding / absent boxes).
    annotation_mask: optional (B, C).
    reduction:       'original' | 'mean' | 'sum' | 'none'.
    """
    B, C, H, W = logits.shape
    if C <= 1:                           # no foreground classes
        error = jnp.zeros((B, 0), jnp.float32)
        return error if reduction == "none" else jnp.float32(0.0)

    N = box_coords.shape[2]
    if N == 0:                           # no boxes at all -> one zero-area box
        box_coords = jnp.zeros((B, C, 1, 4), jnp.int32)
        N = 1

    itemsize = jnp.dtype(logits.dtype).itemsize
    # Row-tile: aim for ~2 MiB of logits per grid step; multiple of 8 unless
    # it spans the whole H axis.
    target_rows = max(8, (2 * 1024 * 1024) // max(1, W * itemsize))
    TH = min(H, target_rows, 256)
    if TH < H:
        TH = max(8, (TH // 8) * 8)
    num_t = pl.cdiv(H, TH)
    CH = 8 if TH % 8 == 0 else TH        # rows per in-kernel compute chunk

    coords = box_coords.reshape(B * C * N, 4).astype(jnp.int32)
    y0, x0, y1, x1 = coords[:, 0], coords[:, 1], coords[:, 2], coords[:, 3]

    with_count = (reduction == "mean")
    kernel = _make_kernel(C, N, H, W, TH, CH, with_count)

    out_shape = [jax.ShapeDtypeStruct((B, C - 1, 1, W), jnp.float32)]
    out_specs = [pl.BlockSpec((None, None, 1, W),
                              lambda b, c, t, *_: (b, c, 0, 0))]
    if with_count:
        out_shape.append(jax.ShapeDtypeStruct((B, C - 1, 1, W), jnp.float32))
        out_specs.append(pl.BlockSpec((None, None, 1, W),
                                      lambda b, c, t, *_: (b, c, 0, 0)))

    block_bytes = TH * W * itemsize
    vmem_limit = int(min(48 * 2 ** 20,                       # v7x-safe ceiling
                         max(16 * 2 ** 20, 4 * block_bytes + (2 << 20))))

    cost = pl.CostEstimate(
        flops=int(B * (C - 1) * num_t * TH * W * (2 * N + 4)),
        transcendentals=0,
        bytes_accessed=int(B * (C - 1) * num_t * TH * W * itemsize
                           + len(out_shape) * B * (C - 1) * W * 4
                           + 4 * B * C * N * 4),
    )

    results = pl.pallas_call(
        kernel,
        out_shape=out_shape,
        grid_spec=pltpu.PrefetchScalarGridSpec(
            num_scalar_prefetch=4,
            grid=(B, C - 1, num_t),
            in_specs=[pl.BlockSpec((None, None, TH, W),
                                   lambda b, c, t, *_: (b, c + 1, t, 0))],
            out_specs=out_specs,
        ),
        compiler_params=pltpu.CompilerParams(
            dimension_semantics=("parallel", "parallel", "arbitrary"),
            vmem_limit_bytes=vmem_limit),
        cost_estimate=cost,
    )(y0, x0, y1, x1, logits)

    # Tiny epilogue: finish the lane reduction, apply penalty + masks.
    outside = jnp.sum(results[0], axis=(-2, -1))             # (B, C-1)
    # InequalityL2Penalty (>= 0 branch is always taken for softmax inputs).
    error = jnp.where(outside >= 0.0, jnp.square(outside), 0.0)
    if annotation_mask is not None:
        error = error * annotation_mask[:, 1:].astype(error.dtype)

    if reduction == "sum":
        return jnp.sum(error)
    if reduction == "mean":
        return jnp.sum(error) / (jnp.sum(results[1]) + 1e-5)
    if reduction == "original":
        return jnp.sum(error) / float(math.prod((H, W)))
    return error  # 'none'


def _reference_loss(logits, box_coords, annotation_mask, reduction="original"):
    """Pure-JAX reference mirroring the PyTorch forward (dense masks from coords)."""
    B, C, H, W = logits.shape
    rows = jnp.arange(H)[None, None, None, :, None]
    cols = jnp.arange(W)[None, None, None, None, :]
    y0 = box_coords[..., 0][..., None, None]
    x0 = box_coords[..., 1][..., None, None]
    y1 = box_coords[..., 2][..., None, None]
    x1 = box_coords[..., 3][..., None, None]
    dense = (rows >= y0) & (rows < y1) & (cols >= x0) & (cols < x1)   # (B,C,N,H,W)
    all_boxes = jnp.any(dense[:, 1:], axis=2)                         # union over N
    outside_mask = ~all_boxes
    outside = jnp.sum(logits[:, 1:] * outside_mask.astype(jnp.float32), axis=(2, 3))
    error = jnp.where(outside >= 0.0, jnp.square(outside), 0.0)
    if annotation_mask is not None:
        error = error * annotation_mask[:, 1:]
    if reduction == "sum":
        return jnp.sum(error)
    if reduction == "mean":
        return jnp.sum(error) / (jnp.sum(outside_mask) + 1e-5)
    if reduction == "original":
        return jnp.sum(error) / float(H * W)
    return error


if __name__ == "__main__":
    B, C, N, H, W = 2, 4, 3, 16, 16

    key = jax.random.PRNGKey(0)
    k_logits, k_y, k_x, k_h, k_w, k_ann = jax.random.split(key, 6)

    # "Softmax logits": softmax over the class dim of random scores.
    logits = jax.nn.softmax(jax.random.normal(k_logits, (B, C, H, W)), axis=1)
    logits = logits.astype(jnp.float32)

    # Random bounding boxes as (y0, x0, y1, x1) rectangles.
    y0 = jax.random.randint(k_y, (B, C, N), 0, H // 2)
    x0 = jax.random.randint(k_x, (B, C, N), 0, W // 2)
    hh = jax.random.randint(k_h, (B, C, N), 2, H // 2)
    ww = jax.random.randint(k_w, (B, C, N), 2, W // 2)
    box_coords = jnp.stack([y0, x0, y0 + hh, x0 + ww], axis=-1).astype(jnp.int32)

    annotation_mask = jax.random.bernoulli(k_ann, 0.8, (B, C)).astype(jnp.float32)

    for red in ("original", "mean", "sum", "none"):
        out = jax.block_until_ready(
            outside_box_emptiness_loss(logits, box_coords, annotation_mask,
                                       reduction=red))
        ref = jax.block_until_ready(
            _reference_loss(logits, box_coords, annotation_mask, reduction=red))
        np.testing.assert_allclose(np.asarray(out), np.asarray(ref),
                                   rtol=1e-5, atol=1e-6)

    print("KERNEL_OK")
</pallas_src>

<mosaic_0001>
module attributes {stable_mosaic.version = 11 : i64} {
  func.func @kernel(%arg0: i32, %arg1: i32, %arg2: i32, %arg3: memref<24xi32, #tpu.memory_space<smem>>, %arg4: memref<24xi32, #tpu.memory_space<smem>>, %arg5: memref<24xi32, #tpu.memory_space<smem>>, %arg6: memref<24xi32, #tpu.memory_space<smem>>, %arg7: memref<1x1x16x16xf32, #tpu.memory_space<vmem>>, %arg8: memref<1x1x1x16xf32, #tpu.memory_space<vmem>>) attributes {dimension_semantics = [#tpu.dimension_semantics<parallel>, #tpu.dimension_semantics<parallel>, #tpu.dimension_semantics<arbitrary>], iteration_bounds = array<i64: 2, 3, 1>, scalar_prefetch = 4 : i64, scratch_operands = 0 : i64, tpu.core_type = #tpu.core_type<tc>, window_params = [{transform_indices = @transform_0, window_bounds = array<i64: 1, 1, 16, 16>}, {transform_indices = @transform_1, window_bounds = array<i64: 1, 1, 1, 16>}]} {
    %c0_i32 = arith.constant 0 : i32
    %0 = arith.cmpi eq, %arg2, %c0_i32 : i32
    %1 = arith.extui %0 : i1 to i32
    %c0_i32_0 = arith.constant 0 : i32
    %2 = arith.cmpi ne, %1, %c0_i32_0 : i32
    scf.if %2 {
      %cst_32 = arith.constant 0.000000e+00 : f32
      %155 = vector.broadcast %cst_32 : f32 to vector<1x16xf32>
      %c0_33 = arith.constant 0 : index
      %c0_34 = arith.constant 0 : index
      %c0_35 = arith.constant 0 : index
      %c0_36 = arith.constant 0 : index
      %156 = vector.load %arg8[%c0_33, %c0_34, %c0_35, %c0_36] : memref<1x1x1x16xf32, #tpu.memory_space<vmem>>, vector<1x1x1x16xf32>
      %157 = vector.shape_cast %156 : vector<1x1x1x16xf32> to vector<1x16xf32>
      %158 = vector.shape_cast %155 : vector<1x16xf32> to vector<1x1x1x16xf32>
      tpu.vector_store %arg8[%c0_33, %c0_34, %c0_35, %c0_36], %158 {strides = array<i32>} : memref<1x1x1x16xf32, #tpu.memory_space<vmem>>, vector<1x1x1x16xf32>,
    } else {
    }
    %c4_i32 = arith.constant 4 : i32
    %3 = arith.muli %arg0, %c4_i32 : i32
    %c1_i32 = arith.constant 1 : i32
    %4 = arith.addi %arg1, %c1_i32 : i32
    %5 = arith.addi %3, %4 : i32
    %c3_i32 = arith.constant 3 : i32
    %6 = arith.muli %5, %c3_i32 : i32
    %7 = tpu.iota {dimensions = array<i32: 1>} : vector<1x16xi32>
    %c0_i32_1 = arith.constant 0 : i32
    %8 = arith.addi %6, %c0_i32_1 : i32
    %9 = arith.index_cast %8 : i32 to index
    %10 = memref.load %arg3[%9] : memref<24xi32, #tpu.memory_space<smem>>
    %11 = arith.index_cast %8 : i32 to index
    %12 = memref.load %arg5[%11] : memref<24xi32, #tpu.memory_space<smem>>
    %13 = arith.index_cast %8 : i32 to index
    %14 = memref.load %arg4[%13] : memref<24xi32, #tpu.memory_space<smem>>
    %15 = vector.broadcast %14 : i32 to vector<1x16xi32>
    %16 = arith.cmpi sge, %7, %15 : vector<1x16xi32>
    %17 = arith.index_cast %8 : i32 to index
    %18 = memref.load %arg6[%17] : memref<24xi32, #tpu.memory_space<smem>>
    %19 = vector.broadcast %18 : i32 to vector<1x16xi32>
    %20 = arith.cmpi slt, %7, %19 : vector<1x16xi32>
    %21 = arith.andi %16, %20 : vector<1x16xi1>
    %c1_i32_2 = arith.constant 1 : i32
    %22 = arith.addi %6, %c1_i32_2 : i32
    %23 = arith.index_cast %22 : i32 to index
    %24 = memref.load %arg3[%23] : memref<24xi32, #tpu.memory_space<smem>>
    %25 = arith.index_cast %22 : i32 to index
    %26 = memref.load %arg5[%25] : memref<24xi32, #tpu.memory_space<smem>>
    %27 = arith.index_cast %22 : i32 to index
    %28 = memref.load %arg4[%27] : memref<24xi32, #tpu.memory_space<smem>>
    %29 = vector.broadcast %28 : i32 to vector<1x16xi32>
    %30 = arith.cmpi sge, %7, %29 : vector<1x16xi32>
    %31 = arith.index_cast %22 : i32 to index
    %32 = memref.load %arg6[%31] : memref<24xi32, #tpu.memory_space<smem>>
    %33 = vector.broadcast %32 : i32 to vector<1x16xi32>
    %34 = arith.cmpi slt, %7, %33 : vector<1x16xi32>
    %35 = arith.andi %30, %34 : vector<1x16xi1>
    %c2_i32 = arith.constant 2 : i32
    %36 = arith.addi %6, %c2_i32 : i32
    %37 = arith.index_cast %36 : i32 to index
    %38 = memref.load %arg3[%37] : memref<24xi32, #tpu.memory_space<smem>>
    %39 = arith.index_cast %36 : i32 to index
    %40 = memref.load %arg5[%39] : memref<24xi32, #tpu.memory_space<smem>>
    %41 = arith.index_cast %36 : i32 to index
    %42 = memref.load %arg4[%41] : memref<24xi32, #tpu.memory_space<smem>>
    %43 = vector.broadcast %42 : i32 to vector<1x16xi32>
    %44 = arith.cmpi sge, %7, %43 : vector<1x16xi32>
    %45 = arith.index_cast %36 : i32 to index
    %46 = memref.load %arg6[%45] : memref<24xi32, #tpu.memory_space<smem>>
    %47 = vector.broadcast %46 : i32 to vector<1x16xi32>
    %48 = arith.cmpi slt, %7, %47 : vector<1x16xi32>
    %49 = arith.andi %44, %48 : vector<1x16xi1>
    %cst = arith.constant 0.000000e+00 : f32
    %50 = vector.broadcast %cst : f32 to vector<1x16xf32>
    %c0_i32_3 = arith.constant 0 : i32
    %c8_i32 = arith.constant 8 : i32
    %51 = arith.muli %c0_i32_3, %c8_i32 : i32
    %52 = tpu.assume_multiple %51, 8 : i32
    %c16_i32 = arith.constant 16 : i32
    %53 = arith.muli %arg2, %c16_i32 : i32
    %c8_i32_4 = arith.constant 8 : i32
    %54 = arith.muli %c0_i32_3, %c8_i32_4 : i32
    %55 = arith.addi %53, %54 : i32
    %56 = tpu.iota {dimensions = array<i32: 0>} : vector<8x1xi32>
    %57 = vector.broadcast %55 : i32 to vector<8x1xi32>
    %58 = arith.addi %57, %56 : vector<8x1xi32>
    %false = arith.constant false
    %59 = vector.broadcast %false : i1 to vector<8x16xi1>
    %60 = vector.broadcast %10 : i32 to vector<8x1xi32>
    %61 = arith.cmpi sge, %58, %60 : vector<8x1xi32>
    %62 = vector.broadcast %12 : i32 to vector<8x1xi32>
    %63 = arith.cmpi slt, %58, %62 : vector<8x1xi32>
    %64 = arith.andi %61, %63 : vector<8x1xi1>
    %65 = vector.broadcast %64 : vector<8x1xi1> to vector<8x16xi1>
    %66 = vector.broadcast %21 : vector<1x16xi1> to vector<8x16xi1>
    %67 = arith.andi %65, %66 : vector<8x16xi1>
    %68 = arith.ori %59, %67 : vector<8x16xi1>
    %69 = vector.broadcast %24 : i32 to vector<8x1xi32>
    %70 = arith.cmpi sge, %58, %69 : vector<8x1xi32>
    %71 = vector.broadcast %26 : i32 to vector<8x1xi32>
    %72 = arith.cmpi slt, %58, %71 : vector<8x1xi32>
    %73 = arith.andi %70, %72 : vector<8x1xi1>
    %74 = vector.broadcast %73 : vector<8x1xi1> to vector<8x16xi1>
    %75 = vector.broadcast %35 : vector<1x16xi1> to vector<8x16xi1>
    %76 = arith.andi %74, %75 : vector<8x16xi1>
    %77 = arith.ori %68, %76 : vector<8x16xi1>
    %78 = vector.broadcast %38 : i32 to vector<8x1xi32>
    %79 = arith.cmpi sge, %58, %78 : vector<8x1xi32>
    %80 = vector.broadcast %40 : i32 to vector<8x1xi32>
    %81 = arith.cmpi slt, %58, %80 : vector<8x1xi32>
    %82 = arith.andi %79, %81 : vector<8x1xi1>
    %83 = vector.broadcast %82 : vector<8x1xi1> to vector<8x16xi1>
    %84 = vector.broadcast %49 : vector<1x16xi1> to vector<8x16xi1>
    %85 = arith.andi %83, %84 : vector<8x16xi1>
    %86 = arith.ori %77, %85 : vector<8x16xi1>
    %c16_i32_5 = arith.constant 16 : i32
    %87 = vector.broadcast %c16_i32_5 : i32 to vector<8x1xi32>
    %88 = arith.cmpi slt, %58, %87 : vector<8x1xi32>
    %cst_6 = arith.constant dense<true> : vector<8x16xi1>
    %89 = arith.xori %86, %cst_6 : vector<8x16xi1>
    %90 = vector.broadcast %88 : vector<8x1xi1> to vector<8x16xi1>
    %91 = arith.andi %90, %89 : vector<8x16xi1>
    %c0 = arith.constant 0 : index
    %c0_7 = arith.constant 0 : index
    %92 = arith.index_cast %52 : i32 to index
    %c0_8 = arith.constant 0 : index
    %93 = vector.load %arg7[%c0, %c0_7, %92, %c0_8] : memref<1x1x16x16xf32, #tpu.memory_space<vmem>>, vector<1x1x8x16xf32>
    %94 = vector.shape_cast %93 : vector<1x1x8x16xf32> to vector<8x16xf32>
    %cst_9 = arith.constant 0.000000e+00 : f32
    %95 = vector.broadcast %cst_9 : f32 to vector<8x16xf32>
    %96 = arith.select %91, %94, %95 : vector<8x16xi1>, vector<8x16xf32>
    %cst_10 = arith.constant dense<0.000000e+00> : vector<16xf32>
    %97 = vector.multi_reduction <add>, %96, %cst_10 [0] : vector<8x16xf32> to vector<16xf32>
    %98 = vector.shape_cast %97 : vector<16xf32> to vector<1x16xf32>
    %99 = arith.addf %50, %98 : vector<1x16xf32>
    %c1_i32_11 = arith.constant 1 : i32
    %c8_i32_12 = arith.constant 8 : i32
    %100 = arith.muli %c1_i32_11, %c8_i32_12 : i32
    %101 = tpu.assume_multiple %100, 8 : i32
    %c16_i32_13 = arith.constant 16 : i32
    %102 = arith.muli %arg2, %c16_i32_13 : i32
    %c8_i32_14 = arith.constant 8 : i32
    %103 = arith.muli %c1_i32_11, %c8_i32_14 : i32
    %104 = arith.addi %102, %103 : i32
    %105 = tpu.iota {dimensions = array<i32: 0>} : vector<8x1xi32>
    %106 = vector.broadcast %104 : i32 to vector<8x1xi32>
    %107 = arith.addi %106, %105 : vector<8x1xi32>
    %false_15 = arith.constant false
    %108 = vector.broadcast %false_15 : i1 to vector<8x16xi1>
    %109 = vector.broadcast %10 : i32 to vector<8x1xi32>
    %110 = arith.cmpi sge, %107, %109 : vector<8x1xi32>
    %111 = vector.broadcast %12 : i32 to vector<8x1xi32>
    %112 = arith.cmpi slt, %107, %111 : vector<8x1xi32>
    %113 = arith.andi %110, %112 : vector<8x1xi1>
    %114 = vector.broadcast %113 : vector<8x1xi1> to vector<8x16xi1>
    %115 = vector.broadcast %21 : vector<1x16xi1> to vector<8x16xi1>
    %116 = arith.andi %114, %115 : vector<8x16xi1>
    %117 = arith.ori %108, %116 : vector<8x16xi1>
    %118 = vector.broadcast %24 : i32 to vector<8x1xi32>
    %119 = arith.cmpi sge, %107, %118 : vector<8x1xi32>
    %120 = vector.broadcast %26 : i32 to vector<8x1xi32>
    %121 = arith.cmpi slt, %107, %120 : vector<8x1xi32>
    %122 = arith.andi %119, %121 : vector<8x1xi1>
    %123 = vector.broadcast %122 : vector<8x1xi1> to vector<8x16xi1>
    %124 = vector.broadcast %35 : vector<1x16xi1> to vector<8x16xi1>
    %125 = arith.andi %123, %124 : vector<8x16xi1>
    %126 = arith.ori %117, %125 : vector<8x16xi1>
    %127 = vector.broadcast %38 : i32 to vector<8x1xi32>
    %128 = arith.cmpi sge, %107, %127 : vector<8x1xi32>
    %129 = vector.broadcast %40 : i32 to vector<8x1xi32>
    %130 = arith.cmpi slt, %107, %129 : vector<8x1xi32>
    %131 = arith.andi %128, %130 : vector<8x1xi1>
    %132 = vector.broadcast %131 : vector<8x1xi1> to vector<8x16xi1>
    %133 = vector.broadcast %49 : vector<1x16xi1> to vector<8x16xi1>
    %134 = arith.andi %132, %133 : vector<8x16xi1>
    %135 = arith.ori %126, %134 : vector<8x16xi1>
    %c16_i32_16 = arith.constant 16 : i32
    %136 = vector.broadcast %c16_i32_16 : i32 to vector<8x1xi32>
    %137 = arith.cmpi slt, %107, %136 : vector<8x1xi32>
    %cst_17 = arith.constant dense<true> : vector<8x16xi1>
    %138 = arith.xori %135, %cst_17 : vector<8x16xi1>
    %139 = vector.broadcast %137 : vector<8x1xi1> to vector<8x16xi1>
    %140 = arith.andi %139, %138 : vector<8x16xi1>
    %c0_18 = arith.constant 0 : index
    %c0_19 = arith.constant 0 : index
    %141 = arith.index_cast %101 : i32 to index
    %c0_20 = arith.constant 0 : index
    %142 = vector.load %arg7[%c0_18, %c0_19, %141, %c0_20] : memref<1x1x16x16xf32, #tpu.memory_space<vmem>>, vector<1x1x8x16xf32>
    %143 = vector.shape_cast %142 : vector<1x1x8x16xf32> to vector<8x16xf32>
    %cst_21 = arith.constant 0.000000e+00 : f32
    %144 = vector.broadcast %cst_21 : f32 to vector<8x16xf32>
    %145 = arith.select %140, %143, %144 : vector<8x16xi1>, vector<8x16xf32>
    %cst_22 = arith.constant dense<0.000000e+00> : vector<16xf32>
    %146 = vector.multi_reduction <add>, %145, %cst_22 [0] : vector<8x16xf32> to vector<16xf32>
    %147 = vector.shape_cast %146 : vector<16xf32> to vector<1x16xf32>
    %148 = arith.addf %99, %147 : vector<1x16xf32>
    %c2_i32_23 = arith.constant 2 : i32
    %c0_24 = arith.constant 0 : index
    %c0_25 = arith.constant 0 : index
    %c0_26 = arith.constant 0 : index
    %c0_27 = arith.constant 0 : index
    %149 = vector.load %arg8[%c0_24, %c0_25, %c0_26, %c0_27] : memref<1x1x1x16xf32, #tpu.memory_space<vmem>>, vector<1x1x1x16xf32>
    %150 = vector.shape_cast %149 : vector<1x1x1x16xf32> to vector<1x16xf32>
    %151 = arith.addf %150, %148 : vector<1x16xf32>
    %c0_28 = arith.constant 0 : index
    %c0_29 = arith.constant 0 : index
    %c0_30 = arith.constant 0 : index
    %c0_31 = arith.constant 0 : index
    %152 = vector.load %arg8[%c0_28, %c0_29, %c0_30, %c0_31] : memref<1x1x1x16xf32, #tpu.memory_space<vmem>>, vector<1x1x1x16xf32>
    %153 = vector.shape_cast %152 : vector<1x1x1x16xf32> to vector<1x16xf32>
    %154 = vector.shape_cast %151 : vector<1x16xf32> to vector<1x1x1x16xf32>
    tpu.vector_store %arg8[%c0_28, %c0_29, %c0_30, %c0_31], %154 {strides = array<i32>} : memref<1x1x1x16xf32, #tpu.memory_space<vmem>>, vector<1x1x1x16xf32>,
    return
  }
  func.func @transform_0(%arg0: i32, %arg1: i32, %arg2: i32, %arg3: memref<24xi32, #tpu.memory_space<smem>>, %arg4: memref<24xi32, #tpu.memory_space<smem>>, %arg5: memref<24xi32, #tpu.memory_space<smem>>, %arg6: memref<24xi32, #tpu.memory_space<smem>>) -> (i32, i32, i32, i32) {
    %c1_i32 = arith.constant 1 : i32
    %0 = arith.addi %arg1, %c1_i32 : i32
    %c0_i32 = arith.constant 0 : i32
    %c0_i32_0 = arith.constant 0 : i32
    return %arg0, %0, %arg2, %c0_i32 : i32, i32, i32, i32
  }
  func.func @transform_1(%arg0: i32, %arg1: i32, %arg2: i32, %arg3: memref<24xi32, #tpu.memory_space<smem>>, %arg4: memref<24xi32, #tpu.memory_space<smem>>, %arg5: memref<24xi32, #tpu.memory_space<smem>>, %arg6: memref<24xi32, #tpu.memory_space<smem>>) -> (i32, i32, i32, i32) {
    %c0_i32 = arith.constant 0 : i32
    %c0_i32_0 = arith.constant 0 : i32
    %c0_i32_1 = arith.constant 0 : i32
    return %arg0, %arg1, %c0_i32, %c0_i32_0 : i32, i32, i32, i32
  }
}

</mosaic_0001>

<llo_original>
// kernel: tpu_custom_call.1
$region0: #{tpu_custom_call.1}
  #allocation0 [shape = 'u32[]', space=smem, size = 0x4, offset = 0x4, fixed_abs, tag = 'smem constant byte address 0x4 - core index']
  #allocation1 [shape = 'u32[144,128]{1,0:T(1,128)}', space=vmem, size = 0x12000, scoped, tag = 'internal scratch']
  #allocation2 [shape = 's32[1]{0}', space=sflag, size = 0x4, scoped, tag = 'scoped memory for tpu_custom_call.1']
  #allocation3 [shape = 'u8[512]{0}', space=smem, size = 0x200, scoped, tag = 'prefetched SMEM operand 0']
  #allocation4 [shape = 'u8[512]{0}', space=smem, size = 0x200, scoped, tag = 'prefetched SMEM operand 1']
  #allocation5 [shape = 'u8[512]{0}', space=smem, size = 0x200, scoped, tag = 'prefetched SMEM operand 2']
  #allocation6 [shape = 'u8[512]{0}', space=smem, size = 0x200, scoped, tag = 'prefetched SMEM operand 3']
  %s0 = inlined_call_operand.hbm [shape: s32[24], index: 0, kind: input, shape index: {}]
  %s1 = inlined_call_operand.vmem [shape: s32[24], index: 1, kind: input, shape index: {}]
  %s2 = inlined_call_operand.vmem [shape: s32[24], index: 2, kind: input, shape index: {}]
  %s3 = inlined_call_operand.vmem [shape: s32[24], index: 3, kind: input, shape index: {}]
  %s4 = inlined_call_operand.hbm [shape: f32[2,4,16,16], index: 4, kind: input, shape index: {}]
  %s5 = inlined_call_operand.hbm [shape: f32[2,3,1,16], index: 5, kind: output, shape index: {}]
  %s6 = sld [smem:[#allocation0]]
  $region45: #{tpu_custom_call.1} parent=0
    _
  %s8 = ssub.s32 1, %s6
  %s9 = scalar_select 0, %s8, %s6
  %11 = dma.hbm_to_smem %s0, 16, [#allocation3], [#allocation2]
  %s12 = sshll.u32 %s1, 4
  %s13 = int_to_ptr.vmem [resolvable:$true] %s12
  %15 = dma.vmem_to_smem %s13, 16, [#allocation4], [#allocation2]
  %s16 = sshll.u32 %s2, 4
  %s17 = int_to_ptr.vmem [resolvable:$true] %s16
  %19 = dma.vmem_to_smem %s17, 16, [#allocation5], [#allocation2]
  %s20 = sshll.u32 %s3, 4
  %s21 = int_to_ptr.vmem [resolvable:$true] %s20
  %23 = dma.vmem_to_smem %s21, 16, [#allocation6], [#allocation2]
  %24 = dma.done [#allocation2], 64
  %25 = sfence
  $region1: #{tpu_custom_call.1} parent=0
    #allocation7 [shape = 'u8[16384]{0}', space=vmem, size = 0x4000, scoped, tag = 'input window, operand 4']
    #allocation8 [shape = 's32[2]{0}', space=sflag, size = 0x8, scoped, tag = 'scoped memory for tpu_custom_call.1']
    #allocation9 [shape = 's32[2]{0}', space=sflag, size = 0x8, scoped, tag = 'scoped memory for tpu_custom_call.1']
    #allocation10 [shape = 'u8[1024]{0}', space=vmem, size = 0x400, scoped, tag = 'output window, operand 0']
    %26 = vsyncpa [#allocation8], 0
    %s27 = scalar_lea.sflag [#allocation8], 1
    %28 = vsyncpa %s27, 0
    %29 = vsyncpa [#allocation9], 0
    %s30 = scalar_lea.sflag [#allocation9], 1
    %31 = vsyncpa %s30, 0
    loop: start=0, step=1, limit=8
    $region2: #{tpu_custom_call.1} parent=1 // loop_pre_header
      _
    $region3: #{tpu_custom_call.1} parent=1 // loop_header
      %s33 = sphi 0, %s37
      %p34 = scmp.ge.s32.totalorder %s33, 8
      %s40 = sphi 0, %s59
      %s41 = sphi 0, %s55
      %s42 = sphi 0, %s51
      %s43 = sphi 0, %s40
      %s44 = sphi 0, %s41
      %s45 = sphi 0, %s42
      %s46 = sphi 0, %s43
      %s47 = sphi 0, %s44
      %s48 = sphi 0, %s45
      %s68 = sphi 0, %s70
      %s71 = sphi 0, %s68
      %s72 = sphi 0, %s71
      %s88 = sphi 0, %s72
      %s96 = sphi 0, %s98
      %s99 = sphi 0, %s96
      %s100 = sphi 0, %s99
      %s116 = sphi 0, %s100
    $region4: #{tpu_custom_call.1} parent=1 // loop_header_branch
      %36 = sbr.rel (%p34) target = $region8
    $region5: #{tpu_custom_call.1} parent=1 // loop_body
      %s38 = ssub.s32 %s33, 1
      %s39 = ssub.s32 %s33, 2
      %s49 = sadd.s32 1, %s42
      %p50 = scmp.ge.s32.totalorder %s49, 1
      %s51 = scalar_select %p50, 0, %s49
      %s52 = sadd.s32 1, %s41
      %s53 = scalar_select %p50, %s52, %s41
      %p54 = scmp.ge.s32.totalorder %s53, 3
      %s55 = scalar_select %p54, 0, %s53
      %s56 = sadd.s32 1, %s40
      %s57 = scalar_select %p54, %s56, %s40
      %p58 = scmp.ge.s32.totalorder %s57, 2
      %s59 = scalar_select %p58, 0, %s57
      %s60 = sadd.s32 %s41, 1
      %s61 = sadd.s32 %s55, 1
      %s62 = ssub.s32 %s40, %s59
      %s63 = ssub.s32 %s60, %s61
      %s64 = sor.u32 %s62, %s63
      %s65 = ssub.s32 %s42, %s51
      %s66 = sor.u32 %s64, %s65
      %p67 = scmp.eq.s32.totalorder %s66, 0
      %s69 = sadd.s32 %s68, 1
      %s70 = scalar_select %p67, %s68, %s69
      %p73 = pneg %p67
      %p74 = scmp.eq.s32.totalorder %s33, 5
      %p75 = por %p73, %p74
      %p76 = scmp.ne.s32.totalorder %s68, %s71
      %p77 = scmp.eq.s32.totalorder %s33, 0
      %p78 = por %p76, %p77
      %p79 = scmp.ne.s32.totalorder %s68, %s71
      %p80 = scmp.eq.s32.totalorder %s38, 5
      %p81 = por %p79, %p80
      %p82 = scmp.ne.s32.totalorder %s71, %s72
      %p83 = scmp.eq.s32.totalorder %s38, 0
      %p84 = por %p82, %p83
      %p85 = scmp.ne.s32.totalorder %s71, %s72
      %p86 = scmp.eq.s32.totalorder %s39, 5
      %p87 = por %p85, %p86
      %p89 = scmp.ne.s32.totalorder %s72, %s88
      %p90 = scmp.eq.s32.totalorder %s39, 0
      %p91 = por %p89, %p90
      %s92 = ssub.s32 %s40, %s59
      %s93 = ssub.s32 %s41, %s55
      %s94 = sor.u32 %s92, %s93
      %p95 = scmp.eq.s32.totalorder %s94, 0
      %s97 = sadd.s32 %s96, 1
      %s98 = scalar_select %p95, %s96, %s97
      %p101 = pneg %p95
      %p102 = scmp.eq.s32.totalorder %s33, 5
      %p103 = por %p101, %p102
      %p104 = scmp.ne.s32.totalorder %s96, %s99
      %p105 = scmp.eq.s32.totalorder %s33, 0
      %p106 = por %p104, %p105
      %p107 = scmp.ne.s32.totalorder %s96, %s99
      %p108 = scmp.eq.s32.totalorder %s38, 5
      %p109 = por %p107, %p108
      %p110 = scmp.ne.s32.totalorder %s99, %s100
      %p111 = scmp.eq.s32.totalorder %s38, 0
      %p112 = por %p110, %p111
      %p113 = scmp.ne.s32.totalorder %s99, %s100
      %p114 = scmp.eq.s32.totalorder %s39, 5
      %p115 = por %p113, %p114
      %p117 = scmp.ne.s32.totalorder %s100, %s116
      %p118 = scmp.eq.s32.totalorder %s39, 0
      %p119 = por %p117, %p118
      %p120 = scmp.le.s32.totalorder 1, %s33
      %p121 = scmp.lt.s32.totalorder %s33, 7
      %p122 = pnand %p120, %p121
      %p123 = pneg %p122
      // Predicated region
      $region9: #{tpu_custom_call.1} parent=5 // pred_check
        _
      $region10: #{tpu_custom_call.1} parent=5 // pred_check_branch
        %125 = sbr.rel (%p122) target = $region12
      $region11: #{tpu_custom_call.1} parent=5 // pred_region
        %s126 = ssub.s32 %s33, 1
      $region12: #{tpu_custom_call.1} parent=5 // pred_fallthru
        _
      %p127 = scmp.lt.s32.totalorder %s33, 6
      // Predicated region
      $region13: #{tpu_custom_call.1} parent=5 // pred_check
        %p128 = pneg %p127
      $region14: #{tpu_custom_call.1} parent=5 // pred_check_branch
        %130 = sbr.rel (%p128) target = $region16
      $region15: #{tpu_custom_call.1} parent=5 // pred_region
        // Predicated region
        $region17: #{tpu_custom_call.1} parent=15 // pred_check
          %p131 = pneg %p78
        $region18: #{tpu_custom_call.1} parent=15 // pred_check_branch
          %133 = sbr.rel (%p131) target = $region20
        $region19: #{tpu_custom_call.1} parent=15 // pred_region
          %s134 = sand.u32 %s68, 1
          %s135 = scalar_lea.sflag [#allocation8], %s134
          %s136 = sand.u32 %s68, 1
          %s137 = smul.addr %s136, 16
          %s138 = scalar_lea.vmem [#allocation7], %s137
          %s139 = sadd.s32 %s41, 1
          %s140 = smul.u32 2, %s42
          %s142 = ssub.s32 256, 256
          %143 = vsyncadd %s135, %s142
          %s144 = smul.addr %s139, 2
          %s145 = sadd.s32 %s140, %s144
          %s146 = smul.addr %s40, 8
          %s147 = sadd.s32 %s145, %s146
          %s148 = smul.addr %s147, 128
          %s149 = scalar_lea.hbm %s4, %s148
          %s150 = sshll.u32 %s138, 4
          %s151 = int_to_ptr.vmem [resolvable:$true] %s150
          %156 = dma.hbm_to_vmem [thread:$0]  %s149, 256, %s151, %s135, 128, 128, 8
        $region20: #{tpu_custom_call.1} parent=15 // pred_fallthru
          _
      $region16: #{tpu_custom_call.1} parent=5 // pred_fallthru
        _
      %p157 = scmp.le.s32.totalorder 1, %s33
      %p158 = scmp.lt.s32.totalorder %s33, 7
      %p159 = pnand %p157, %p158
      %p160 = pneg %p159
      // Predicated region
      $region21: #{tpu_custom_call.1} parent=5 // pred_check
        _
      $region22: #{tpu_custom_call.1} parent=5 // pred_check_branch
        %162 = sbr.rel (%p159) target = $region24
      $region23: #{tpu_custom_call.1} parent=5 // pred_region
        %s163 = ssub.s32 %s33, 1
        %s164 = sand.u32 %s71, 1
        %s165 = scalar_lea.sflag [#allocation8], %s164
        %s166 = sand.u32 %s71, 1
        %s167 = smul.addr %s166, 16
        %s168 = scalar_lea.vmem [#allocation7], %s167
        // Predicated region
        $region25: #{tpu_custom_call.1} parent=23 // pred_check
          %p169 = pneg %p84
        $region26: #{tpu_custom_call.1} parent=23 // pred_check_branch
          %171 = sbr.rel (%p169) target = $region28
        $region27: #{tpu_custom_call.1} parent=23 // pred_region
          %172 = dma.done %s165, 256
        $region28: #{tpu_custom_call.1} parent=23 // pred_fallthru
          _
        %s173 = sand.u32 %s71, 1
        %s174 = scalar_lea.sflag [#allocation8], %s173
        %s175 = sand.u32 %s71, 1
        %s176 = smul.addr %s175, 16
        %s177 = scalar_lea.vmem [#allocation7], %s176
        %p178 = pneg %p84
        %p179 = pneg %p81
        %p180 = pneg %p112
        %p181 = pneg %p109
        %s182 = sand.u32 %s99, 1
        %s183 = scalar_lea.sflag [#allocation9], %s182
        %s184 = sand.u32 %s99, 1
        %s185 = scalar_lea.vmem [#allocation10], %s184
        %s186 = sadd.s32 %s44, 1
        %s187 = smul.u32 2, %s45
        %p188 = scmp.eq.s32.totalorder %s45, 0
        // Predicated region
        $region29: #{tpu_custom_call.1} parent=23 // pred_check
          %p189 = pneg %p188
        $region30: #{tpu_custom_call.1} parent=23 // pred_check_branch
          %191 = sbr.rel (%p189) target = $region32
        $region31: #{tpu_custom_call.1} parent=23 // pred_region
          %vm192 = vcmask 122880
          %193 = vst.msk [vmem:[%s185] sm:$0x1] %vm192, 0.0
        $region32: #{tpu_custom_call.1} parent=23 // pred_fallthru
          _
        %s194 = smul.u32 %s43, 4
        %s195 = sadd.s32 %s44, 1
        %s196 = sadd.s32 %s194, %s195
        %s197 = smul.u32 %s196, 3
        %v198 = vlaneseq
        %v199 = vand.u32 %v198, 127
        %s200 = sld [smem:[#allocation3 + %s197]]
        %s201 = sld [smem:[#allocation5 + %s197]]
        %s202 = sld [smem:[#allocation4 + %s197]]
        %v203 = vstv %s202
        %vm204 = vcmp.ge.s32.totalorder %v199, %v203
        %s205 = sld [smem:[#allocation6 + %s197]]
        %v206 = vstv %s205
        %vm207 = vcmp.lt.s32.totalorder %v199, %v206
        %vm208 = vmand %vm204, %vm207
        %s209 = sadd.s32 %s197, 1
        %s210 = sld [smem:[#allocation3 + %s209]]
        %s211 = sld [smem:[#allocation5 + %s209]]
        %s212 = sld [smem:[#allocation4 + %s209]]
        %v213 = vstv %s212
        %vm214 = vcmp.ge.s32.totalorder %v199, %v213
        %s215 = sld [smem:[#allocation6 + %s209]]
        %v216 = vstv %s215
        %vm217 = vcmp.lt.s32.totalorder %v199, %v216
        %vm218 = vmand %vm214, %vm217
        %s219 = sadd.s32 %s197, 2
        %s220 = sld [smem:[#allocation3 + %s219]]
        %s221 = sld [smem:[#allocation5 + %s219]]
        %s222 = sld [smem:[#allocation4 + %s219]]
        %v223 = vstv %s222
        %vm224 = vcmp.ge.s32.totalorder %v199, %v223
        %s225 = sld [smem:[#allocation6 + %s219]]
        %v226 = vstv %s225
        %vm227 = vcmp.lt.s32.totalorder %v199, %v226
        %vm228 = vmand %vm224, %vm227
        %s229 = smul.u32 %s45, 16
        %v230 = vlaneseq
        %v231 = vshrl.u32 %v230, 7
        %v232 = vstv %s229
        %v233 = vadd.s32 %v232, %v231
        %v234 = vstv %s200
        %vm235 = vcmp.ge.s32.totalorder %v233, %v234
        %v236 = vstv %s201
        %vm237 = vcmp.lt.s32.totalorder %v233, %v236
        %vm238 = vmand %vm235, %vm237
        %v239 = vsel %vm238, 1, 0
        %vm240 = vcmp.eq.s32.totalorder %v239, 1
        %v241 = vsel %vm208, 1, 0
        %vm242 = vcmp.eq.s32.totalorder %v241, 1
        %vm243 = vmand %vm240, %vm242
        %v244 = vstv %s210
        %vm245 = vcmp.ge.s32.totalorder %v233, %v244
        %v246 = vstv %s211
        %vm247 = vcmp.lt.s32.totalorder %v233, %v246
        %vm248 = vmand %vm245, %vm247
        %v249 = vsel %vm248, 1, 0
        %vm250 = vcmp.eq.s32.totalorder %v249, 1
        %v251 = vsel %vm218, 1, 0
        %vm252 = vcmp.eq.s32.totalorder %v251, 1
        %vm253 = vmand %vm250, %vm252
        %vm254 = vmor %vm243, %vm253
        %v255 = vstv %s220
        %vm256 = vcmp.ge.s32.totalorder %v233, %v255
        %v257 = vstv %s221
        %vm258 = vcmp.lt.s32.totalorder %v233, %v257
        %vm259 = vmand %vm256, %vm258
        %v260 = vsel %vm259, 1, 0
        %vm261 = vcmp.eq.s32.totalorder %v260, 1
        %v262 = vsel %vm228, 1, 0
        %vm263 = vcmp.eq.s32.totalorder %v262, 1
        %vm264 = vmand %vm261, %vm263
        %vm265 = vmor %vm254, %vm264
        %vm266 = vcmp.lt.s32.totalorder %v233, 16
        %vm267 = vmxor %vm265, 1
        %v268 = vsel %vm266, 1, 0
        %vm269 = vcmp.eq.s32.totalorder %v268, 1
        %vm270 = vmand %vm269, %vm267
        %v271 = vld [vmem:[%s168] sm:$0xff]
        %v272 = vsel %vm270, %v271, 0.0
        %vm273 = vcmask 130048
        %v274 = vsel %vm273, %v272, 0.0
        %v275 = vrot.slane %v274, 4
        %v276 = vadd.f32 %v274, %v275
        %v277 = vrot.slane %v276, 2
        %v278 = vadd.f32 %v276, %v277
        %v279 = vrot.slane %v278, 1
        %v280 = vadd.f32 %v278, %v279
        %v281 = vadd.f32 %v280, 0.0
        %s282 = sadd.s32 %s229, 8
        %v283 = vstv %s282
        %v284 = vadd.s32 %v283, %v231
        %vm285 = vcmp.ge.s32.totalorder %v284, %v234
        %vm286 = vcmp.lt.s32.totalorder %v284, %v236
        %vm287 = vmand %vm285, %vm286
        %v288 = vsel %vm287, 1, 0
        %vm289 = vcmp.eq.s32.totalorder %v288, 1
        %vm290 = vmand %vm289, %vm242
        %vm291 = vcmp.ge.s32.totalorder %v284, %v244
        %vm292 = vcmp.lt.s32.totalorder %v284, %v246
        %vm293 = vmand %vm291, %vm292
        %v294 = vsel %vm293, 1, 0
        %vm295 = vcmp.eq.s32.totalorder %v294, 1
        %vm296 = vmand %vm295, %vm252
        %vm297 = vmor %vm290, %vm296
        %vm298 = vcmp.ge.s32.totalorder %v284, %v255
        %vm299 = vcmp.lt.s32.totalorder %v284, %v257
        %vm300 = vmand %vm298, %vm299
        %v301 = vsel %vm300, 1, 0
        %vm302 = vcmp.eq.s32.totalorder %v301, 1
        %vm303 = vmand %vm302, %vm263
        %vm304 = vmor %vm297, %vm303
        %vm305 = vcmp.lt.s32.totalorder %v284, 16
        %vm306 = vmxor %vm304, 1
        %v307 = vsel %vm305, 1, 0
        %vm308 = vcmp.eq.s32.totalorder %v307, 1
        %vm309 = vmand %vm308, %vm306
        %s310 = scalar_lea.vmem %s168, 8 [#allocation7]
        %v311 = vld [vmem:[%s310] sm:$0xff]
        %v312 = vsel %vm309, %v311, 0.0
        %v313 = vsel %vm273, %v312, 0.0
        %v314 = vrot.slane %v313, 4
        %v315 = vadd.f32 %v313, %v314
        %v316 = vrot.slane %v315, 2
        %v317 = vadd.f32 %v315, %v316
        %v318 = vrot.slane %v317, 1
        %v319 = vadd.f32 %v317, %v318
        %v320 = vadd.f32 %v281, %v319
        %v321 = vld [vmem:[%s185] sm:$0x1]
        %v322 = vadd.f32 %v321, %v320
        %vm323 = vcmask 122880
        %324 = vst.msk [vmem:[%s185] sm:$0x1] %vm323, %v322
        %s325 = sand.u32 %s99, 1
        %s326 = scalar_lea.sflag [#allocation9], %s325
        %s327 = sand.u32 %s99, 1
        %s328 = scalar_lea.vmem [#allocation10], %s327
        // Predicated region
        $region33: #{tpu_custom_call.1} parent=23 // pred_check
          %p329 = pneg %p109
        $region34: #{tpu_custom_call.1} parent=23 // pred_check_branch
          %331 = sbr.rel (%p329) target = $region36
        $region35: #{tpu_custom_call.1} parent=23 // pred_region
          %s333 = ssub.s32 16, 16
          %334 = vsyncadd %s326, %s333
          %s335 = smul.addr %s43, 3
          %s336 = sadd.s32 %s44, %s335
          %s337 = smul.addr %s336, 16
          %s338 = scalar_lea.hbm %s5, %s337
          %s340 = sshll.u32 %s328, 4
          %s341 = int_to_ptr.vmem [resolvable:$true] %s340
          %343 = dma.vmem_to_hbm [thread:$0]  %s341, 16, %s338, %s326
        $region36: #{tpu_custom_call.1} parent=23 // pred_fallthru
          _
      $region24: #{tpu_custom_call.1} parent=5 // pred_fallthru
        _
      %p344 = scmp.le.s32.totalorder 2, %s33
      // Predicated region
      $region37: #{tpu_custom_call.1} parent=5 // pred_check
        %p345 = pneg %p344
      $region38: #{tpu_custom_call.1} parent=5 // pred_check_branch
        %347 = sbr.rel (%p345) target = $region40
      $region39: #{tpu_custom_call.1} parent=5 // pred_region
        %s348 = ssub.s32 %s33, 2
        // Predicated region
        $region41: #{tpu_custom_call.1} parent=39 // pred_check
          %p349 = pneg %p115
        $region42: #{tpu_custom_call.1} parent=39 // pred_check_branch
          %351 = sbr.rel (%p349) target = $region44
        $region43: #{tpu_custom_call.1} parent=39 // pred_region
          %s352 = sand.u32 %s100, 1
          %s353 = scalar_lea.sflag [#allocation9], %s352
          %s354 = sand.u32 %s100, 1
          %s355 = scalar_lea.vmem [#allocation10], %s354
          %356 = dma.done %s353, 16
        $region44: #{tpu_custom_call.1} parent=39 // pred_fallthru
          _
      $region40: #{tpu_custom_call.1} parent=5 // pred_fallthru
        _
    $region6: #{tpu_custom_call.1} parent=1 // loop_footer
      %s37 = sadd.s32 1, %s33
    $region7: #{tpu_custom_call.1} parent=1 // loop_footer_branch
      %32 = sbr.rel target = $region3
    $region8: #{tpu_custom_call.1} parent=1 // loop_exit
      _
    %357 = vsyncpa [#allocation8], 1
    %s358 = scalar_lea.sflag [#allocation8], 1
    %359 = vsyncpa %s358, 1
    %360 = vsyncpa [#allocation9], 1
    %s361 = scalar_lea.sflag [#allocation9], 1
    %362 = vsyncpa %s361, 1

</llo_original>
